<compile_context>
chip_gen: v5e
topology: v5e:2x2
jax: 0.10.0
libtpu: 0.0.40
codegen_flags: <defaults>
</compile_context>

<pallas_src>
import functools

import jax
import jax.numpy as jnp
from jax.experimental import pallas as pl
from jax.experimental.pallas import tpu as pltpu


# ------------------------------ fused kernel ---------------------------------

def _cls_mix_attn_kernel(x_ref, w_qkv_ref, b_qkv_ref, w_proj_ref, b_proj_ref,
                         o_ref, *, num_heads, nt, scale):
    # x_ref block: (1, N, C) = one batch element; weights fully resident in VMEM.
    x = x_ref[0]                                   # (N, C)
    N, C = x.shape
    H = num_heads
    D = C // H

    # --- fused QKV projection (one MXU matmul) ---
    qkv = jnp.dot(x, w_qkv_ref[...], preferred_element_type=jnp.float32)
    qkv = qkv + b_qkv_ref[...]                     # (N, 3C), f32

    # One additive mask serves all three streams:
    #   row 0           (cls query)      -> attends to every key
    #   rows [1, 1+nt)  (temporal query) -> attends to temporal keys only
    #   rows [1+nt, N)  (spatial query)  -> attends to every key
    row = jax.lax.broadcasted_iota(jnp.int32, (N, N), 0)
    col = jax.lax.broadcasted_iota(jnp.int32, (N, N), 1)
    is_t_row = jnp.logical_and(row >= 1, row < 1 + nt)
    is_t_col = jnp.logical_and(col >= 1, col < 1 + nt)
    blocked = jnp.logical_and(is_t_row, jnp.logical_not(is_t_col))   # (N, N)

    head_outs = []
    for h in range(H):                             # static unroll over heads
        q_h = qkv[:, 0 * C + h * D:0 * C + (h + 1) * D]   # (N, D)
        k_h = qkv[:, 1 * C + h * D:1 * C + (h + 1) * D]   # (N, D)
        v_h = qkv[:, 2 * C + h * D:2 * C + (h + 1) * D]   # (N, D)

        # scores = q @ k^T : contract last dims directly (no explicit transpose)
        s = jax.lax.dot_general(
            q_h, k_h, (((1,), (1,)), ((), ())),
            preferred_element_type=jnp.float32) * scale          # (N, N)
        s = jnp.where(blocked, jnp.float32(-1e30), s)

        # Max-stabilized softmax; divide via EUP approximate reciprocal.
        s = s - jnp.max(s, axis=-1, keepdims=True)
        p = jnp.exp(s)
        p = p * pl.reciprocal(jnp.sum(p, axis=-1, keepdims=True), approx=True)

        # Weighted sum over the full value set; masked columns contribute zero,
        # so temporal rows effectively use v_t only (matches the module).
        head_outs.append(
            jnp.dot(p, v_h, preferred_element_type=jnp.float32))  # (N, D)

    # Lane-dense 'b t (h d)' layout.  Token order already equals
    # torch.cat([x_cls, x_t, x_s], dim=1) because rows never move.
    attn_out = jnp.concatenate(head_outs, axis=-1)                # (N, C)

    # --- fused output projection ---
    y = jnp.dot(attn_out, w_proj_ref[...], preferred_element_type=jnp.float32)
    y = y + b_proj_ref[...]
    o_ref[0] = y.astype(o_ref.dtype)


# ------------------------------ module wrapper --------------------------------

def init_cls_mix_attention_params(key, dim, num_heads, qkv_bias=False):
    k1, k2, k3 = jax.random.split(key, 3)
    bound = 1.0 / jnp.sqrt(dim)
    return {
        "num_heads": num_heads,
        # stored as (in, out) so the kernel computes x @ W (== x @ W_torch^T)
        "w_qkv": jax.random.uniform(k1, (dim, dim * 3), jnp.float32, -bound, bound),
        "b_qkv": (jax.random.uniform(k2, (dim * 3,), jnp.float32, -bound, bound)
                  if qkv_bias else jnp.zeros((dim * 3,), jnp.float32)),
        "w_proj": jax.random.uniform(k3, (dim, dim), jnp.float32, -bound, bound),
        "b_proj": jnp.zeros((dim,), jnp.float32),
    }


def cls_mix_attention_forward(params, x, t_h, t_w, s_h, s_w,
                              online_size=1, padding_mask=None):
    # TODO(synk): padding_mask path not implemented (module default is None);
    # attn_drop / proj_drop are identity at the default p=0.0 / eval.
    assert padding_mask is None
    B, N, C = x.shape
    H = params["num_heads"]
    D = C // H
    scale = float(D) ** (-0.5)
    nt = t_h * t_w * (1 + online_size)
    ns = s_h * s_w
    assert N == 1 + nt + ns

    w_qkv = params["w_qkv"]                       # (C, 3C)
    b_qkv = params["b_qkv"].reshape(1, 3 * C)
    w_proj = params["w_proj"]                     # (C, C)
    b_proj = params["b_proj"].reshape(1, C)

    flops = B * (2 * N * C * 3 * C        # qkv projection
                 + 4 * H * N * N * D      # scores + PV
                 + 2 * N * C * C)         # output projection
    bytes_accessed = 4 * (2 * B * N * C + C * 3 * C + 3 * C + C * C + C)
    cost = pl.CostEstimate(flops=flops,
                           transcendentals=B * H * N * N,
                           bytes_accessed=bytes_accessed)

    kernel = functools.partial(_cls_mix_attn_kernel,
                               num_heads=H, nt=nt, scale=scale)
    # NOTE: for production sizes (large B*N) add a second grid axis tiling the
    # token dim; at these shapes one batch element per step fits VMEM easily on
    # v5e/v6e/v7x with the default scoped limit.
    return pl.pallas_call(
        kernel,
        out_shape=jax.ShapeDtypeStruct((B, N, C), x.dtype),
        grid=(B,),
        in_specs=[
            pl.BlockSpec((1, N, C), lambda b: (b, 0, 0)),       # x (per batch)
            pl.BlockSpec((C, 3 * C), lambda b: (0, 0)),          # w_qkv (resident)
            pl.BlockSpec((1, 3 * C), lambda b: (0, 0)),          # b_qkv
            pl.BlockSpec((C, C), lambda b: (0, 0)),              # w_proj
            pl.BlockSpec((1, C), lambda b: (0, 0)),              # b_proj
        ],
        out_specs=pl.BlockSpec((1, N, C), lambda b: (b, 0, 0)),  # lane-dense (b t (h d))
        compiler_params=pltpu.CompilerParams(
            dimension_semantics=("parallel",)),
        cost_estimate=cost,
    )(x, w_qkv, b_qkv, w_proj, b_proj)


# ------------------------------ pure-JAX reference ----------------------------

def cls_mix_attention_reference(params, x, t_h, t_w, s_h, s_w, online_size=1):
    B, N, C = x.shape
    H = params["num_heads"]
    D = C // H
    scale = float(D) ** (-0.5)
    nt = t_h * t_w * (1 + online_size)

    qkv = x @ params["w_qkv"] + params["b_qkv"]
    qkv = qkv.reshape(B, N, 3, H, D).transpose(2, 0, 3, 1, 4)    # (3, B, H, N, D)
    q, k, v = qkv[0], qkv[1], qkv[2]
    q_cls, q_t, q_s = q[:, :, :1], q[:, :, 1:1 + nt], q[:, :, 1 + nt:]
    k_t = k[:, :, 1:1 + nt]
    v_t = v[:, :, 1:1 + nt]

    def attend(qq, kk, vv):
        a = jax.nn.softmax(
            jnp.einsum('bhqd,bhkd->bhqk', qq, kk) * scale, axis=-1)
        return jnp.einsum('bhqk,bhkd->bhqd', a, vv)

    x_cls = attend(q_cls, k, v)
    x_t = attend(q_t, k_t, v_t)
    x_s = attend(q_s, k, v)
    out = jnp.concatenate([x_cls, x_t, x_s], axis=2)             # (B, H, N, D)
    out = out.transpose(0, 2, 1, 3).reshape(B, N, C)
    return out @ params["w_proj"] + params["b_proj"]


# ---------------------------------- main --------------------------------------

if __name__ == "__main__":
    key = jax.random.PRNGKey(0)
    k_param, k_x = jax.random.split(key)

    dim = 32
    num_heads = 2
    t_h, t_w = 2, 2
    s_h, s_w = 4, 4
    online_size = 1
    B = 2
    N = 1 + t_h * t_w * (1 + online_size) + s_h * s_w   # 1 + 8 + 16 = 25

    params = init_cls_mix_attention_params(k_param, dim, num_heads, qkv_bias=False)
    x = jax.random.normal(k_x, (B, N, dim), dtype=jnp.float32)

    y = cls_mix_attention_forward(params, x, t_h, t_w, s_h, s_w, online_size)
    jax.block_until_ready(y)
    assert y.shape == (B, N, dim)

    y_ref = cls_mix_attention_reference(params, x, t_h, t_w, s_h, s_w, online_size)
    max_err = float(jnp.max(jnp.abs(y - y_ref)))
    assert max_err < 2e-2, f"max abs err {max_err}"
    print("KERNEL_OK")
</pallas_src>

<mosaic_0001>
module attributes {stable_mosaic.version = 11 : i64} {
  func.func @_cls_mix_attn_kernel(%arg0: i32, %arg1: memref<1x25x32xf32, #tpu.memory_space<vmem>>, %arg2: memref<32x96xf32, #tpu.memory_space<vmem>>, %arg3: memref<1x96xf32, #tpu.memory_space<vmem>>, %arg4: memref<32x32xf32, #tpu.memory_space<vmem>>, %arg5: memref<1x32xf32, #tpu.memory_space<vmem>>, %arg6: memref<1x25x32xf32, #tpu.memory_space<vmem>>) attributes {dimension_semantics = [#tpu.dimension_semantics<parallel>], iteration_bounds = array<i64: 2>, scalar_prefetch = 0 : i64, scratch_operands = 0 : i64, tpu.core_type = #tpu.core_type<tc>, window_params = [{transform_indices = @transform_0, window_bounds = array<i64: 1, 25, 32>}, {pipeline_mode = #tpu.pipeline_mode<synchronous>, transform_indices = @transform_1, window_bounds = array<i64: 32, 96>}, {pipeline_mode = #tpu.pipeline_mode<synchronous>, transform_indices = @transform_2, window_bounds = array<i64: 1, 96>}, {pipeline_mode = #tpu.pipeline_mode<synchronous>, transform_indices = @transform_3, window_bounds = array<i64: 32, 32>}, {pipeline_mode = #tpu.pipeline_mode<synchronous>, transform_indices = @transform_4, window_bounds = array<i64: 1, 32>}, {transform_indices = @transform_5, window_bounds = array<i64: 1, 25, 32>}]} {
    %c0 = arith.constant 0 : index
    %c0_0 = arith.constant 0 : index
    %c0_1 = arith.constant 0 : index
    %0 = vector.load %arg1[%c0, %c0_0, %c0_1] : memref<1x25x32xf32, #tpu.memory_space<vmem>>, vector<1x25x32xf32>
    %1 = vector.shape_cast %0 : vector<1x25x32xf32> to vector<25x32xf32>
    %c0_2 = arith.constant 0 : index
    %c0_3 = arith.constant 0 : index
    %2 = vector.load %arg2[%c0_2, %c0_3] : memref<32x96xf32, #tpu.memory_space<vmem>>, vector<32x96xf32>
    %cst = arith.constant dense<0.000000e+00> : vector<25x96xf32>
    %3 = tpu.matmul %1, %2, %cst {dimension_numbers = #tpu.dot_dimension_numbers<[1], [0], [0], [1], [0, 0, 1, 1], [], []>} : vector<25x32xf32>, vector<32x96xf32>, vector<25x96xf32> -> vector<25x96xf32>
    %c0_4 = arith.constant 0 : index
    %c0_5 = arith.constant 0 : index
    %4 = vector.load %arg3[%c0_4, %c0_5] : memref<1x96xf32, #tpu.memory_space<vmem>>, vector<1x96xf32>
    %5 = vector.broadcast %4 : vector<1x96xf32> to vector<25x96xf32>
    %6 = arith.addf %3, %5 : vector<25x96xf32>
    %7 = tpu.iota {dimensions = array<i32: 0>} : vector<25x25xi32>
    %8 = tpu.iota {dimensions = array<i32: 1>} : vector<25x25xi32>
    %c1_i32 = arith.constant 1 : i32
    %9 = vector.broadcast %c1_i32 : i32 to vector<25x25xi32>
    %10 = arith.cmpi sge, %7, %9 : vector<25x25xi32>
    %c9_i32 = arith.constant 9 : i32
    %11 = vector.broadcast %c9_i32 : i32 to vector<25x25xi32>
    %12 = arith.cmpi slt, %7, %11 : vector<25x25xi32>
    %13 = arith.andi %10, %12 : vector<25x25xi1>
    %c1_i32_6 = arith.constant 1 : i32
    %14 = vector.broadcast %c1_i32_6 : i32 to vector<25x25xi32>
    %15 = arith.cmpi sge, %8, %14 : vector<25x25xi32>
    %c9_i32_7 = arith.constant 9 : i32
    %16 = vector.broadcast %c9_i32_7 : i32 to vector<25x25xi32>
    %17 = arith.cmpi slt, %8, %16 : vector<25x25xi32>
    %18 = arith.andi %15, %17 : vector<25x25xi1>
    %cst_8 = arith.constant dense<true> : vector<25x25xi1>
    %19 = arith.xori %18, %cst_8 : vector<25x25xi1>
    %20 = arith.andi %13, %19 : vector<25x25xi1>
    %21 = vector.extract_strided_slice %6 {offsets = [0, 0], sizes = [25, 16], strides = [1, 1]} : vector<25x96xf32> to vector<25x16xf32>
    %22 = vector.extract_strided_slice %6 {offsets = [0, 32], sizes = [25, 16], strides = [1, 1]} : vector<25x96xf32> to vector<25x16xf32>
    %23 = vector.extract_strided_slice %6 {offsets = [0, 64], sizes = [25, 16], strides = [1, 1]} : vector<25x96xf32> to vector<25x16xf32>
    %cst_9 = arith.constant dense<0.000000e+00> : vector<25x25xf32>
    %24 = tpu.matmul %21, %22, %cst_9 {dimension_numbers = #tpu.dot_dimension_numbers<[1], [1], [0], [0], [0, 0, 1, 0], [], []>} : vector<25x16xf32>, vector<25x16xf32>, vector<25x25xf32> -> vector<25x25xf32>
    %cst_10 = arith.constant 2.500000e-01 : f32
    %25 = vector.broadcast %cst_10 : f32 to vector<25x25xf32>
    %26 = arith.mulf %24, %25 : vector<25x25xf32>
    %cst_11 = arith.constant -1.000000e+30 : f32
    %27 = vector.broadcast %cst_11 : f32 to vector<25x25xf32>
    %28 = arith.select %20, %27, %26 : vector<25x25xi1>, vector<25x25xf32>
    %cst_12 = arith.constant dense<0xFF800000> : vector<25xf32>
    %29 = vector.multi_reduction <maximumf>, %28, %cst_12 [1] : vector<25x25xf32> to vector<25xf32>
    %30 = vector.shape_cast %29 : vector<25xf32> to vector<25x1xf32>
    %31 = vector.broadcast %30 : vector<25x1xf32> to vector<25x25xf32>
    %32 = arith.subf %28, %31 : vector<25x25xf32>
    %33 = math.exp %32 : vector<25x25xf32>
    %cst_13 = arith.constant dense<0.000000e+00> : vector<25xf32>
    %34 = vector.multi_reduction <add>, %33, %cst_13 [1] : vector<25x25xf32> to vector<25xf32>
    %35 = vector.shape_cast %34 : vector<25xf32> to vector<25x1xf32>
    %36 = tpu.reciprocal %35 {approx = true} : vector<25x1xf32> -> vector<25x1xf32>
    %37 = vector.broadcast %36 : vector<25x1xf32> to vector<25x25xf32>
    %38 = arith.mulf %33, %37 : vector<25x25xf32>
    %cst_14 = arith.constant dense<0.000000e+00> : vector<25x16xf32>
    %39 = tpu.matmul %38, %23, %cst_14 {dimension_numbers = #tpu.dot_dimension_numbers<[1], [0], [0], [1], [0, 0, 1, 1], [], []>} : vector<25x25xf32>, vector<25x16xf32>, vector<25x16xf32> -> vector<25x16xf32>
    %40 = vector.extract_strided_slice %6 {offsets = [0, 16], sizes = [25, 16], strides = [1, 1]} : vector<25x96xf32> to vector<25x16xf32>
    %41 = vector.extract_strided_slice %6 {offsets = [0, 48], sizes = [25, 16], strides = [1, 1]} : vector<25x96xf32> to vector<25x16xf32>
    %42 = vector.extract_strided_slice %6 {offsets = [0, 80], sizes = [25, 16], strides = [1, 1]} : vector<25x96xf32> to vector<25x16xf32>
    %cst_15 = arith.constant dense<0.000000e+00> : vector<25x25xf32>
    %43 = tpu.matmul %40, %41, %cst_15 {dimension_numbers = #tpu.dot_dimension_numbers<[1], [1], [0], [0], [0, 0, 1, 0], [], []>} : vector<25x16xf32>, vector<25x16xf32>, vector<25x25xf32> -> vector<25x25xf32>
    %cst_16 = arith.constant 2.500000e-01 : f32
    %44 = vector.broadcast %cst_16 : f32 to vector<25x25xf32>
    %45 = arith.mulf %43, %44 : vector<25x25xf32>
    %cst_17 = arith.constant -1.000000e+30 : f32
    %46 = vector.broadcast %cst_17 : f32 to vector<25x25xf32>
    %47 = arith.select %20, %46, %45 : vector<25x25xi1>, vector<25x25xf32>
    %cst_18 = arith.constant dense<0xFF800000> : vector<25xf32>
    %48 = vector.multi_reduction <maximumf>, %47, %cst_18 [1] : vector<25x25xf32> to vector<25xf32>
    %49 = vector.shape_cast %48 : vector<25xf32> to vector<25x1xf32>
    %50 = vector.broadcast %49 : vector<25x1xf32> to vector<25x25xf32>
    %51 = arith.subf %47, %50 : vector<25x25xf32>
    %52 = math.exp %51 : vector<25x25xf32>
    %cst_19 = arith.constant dense<0.000000e+00> : vector<25xf32>
    %53 = vector.multi_reduction <add>, %52, %cst_19 [1] : vector<25x25xf32> to vector<25xf32>
    %54 = vector.shape_cast %53 : vector<25xf32> to vector<25x1xf32>
    %55 = tpu.reciprocal %54 {approx = true} : vector<25x1xf32> -> vector<25x1xf32>
    %56 = vector.broadcast %55 : vector<25x1xf32> to vector<25x25xf32>
    %57 = arith.mulf %52, %56 : vector<25x25xf32>
    %cst_20 = arith.constant dense<0.000000e+00> : vector<25x16xf32>
    %58 = tpu.matmul %57, %42, %cst_20 {dimension_numbers = #tpu.dot_dimension_numbers<[1], [0], [0], [1], [0, 0, 1, 1], [], []>} : vector<25x25xf32>, vector<25x16xf32>, vector<25x16xf32> -> vector<25x16xf32>
    %59 = tpu.concatenate %39, %58 in 1 : vector<25x16xf32>, vector<25x16xf32> -> vector<25x32xf32>
    %c0_21 = arith.constant 0 : index
    %c0_22 = arith.constant 0 : index
    %60 = vector.load %arg4[%c0_21, %c0_22] : memref<32x32xf32, #tpu.memory_space<vmem>>, vector<32x32xf32>
    %cst_23 = arith.constant dense<0.000000e+00> : vector<25x32xf32>
    %61 = tpu.matmul %59, %60, %cst_23 {dimension_numbers = #tpu.dot_dimension_numbers<[1], [0], [0], [1], [0, 0, 1, 1], [], []>} : vector<25x32xf32>, vector<32x32xf32>, vector<25x32xf32> -> vector<25x32xf32>
    %c0_24 = arith.constant 0 : index
    %c0_25 = arith.constant 0 : index
    %62 = vector.load %arg5[%c0_24, %c0_25] : memref<1x32xf32, #tpu.memory_space<vmem>>, vector<1x32xf32>
    %63 = vector.broadcast %62 : vector<1x32xf32> to vector<25x32xf32>
    %64 = arith.addf %61, %63 : vector<25x32xf32>
    %c0_26 = arith.constant 0 : index
    %c0_27 = arith.constant 0 : index
    %c0_28 = arith.constant 0 : index
    %65 = vector.load %arg6[%c0_26, %c0_27, %c0_28] : memref<1x25x32xf32, #tpu.memory_space<vmem>>, vector<1x25x32xf32>
    %66 = vector.shape_cast %65 : vector<1x25x32xf32> to vector<25x32xf32>
    %67 = vector.shape_cast %64 : vector<25x32xf32> to vector<1x25x32xf32>
    tpu.vector_store %arg6[%c0_26, %c0_27, %c0_28], %67 {strides = array<i32>} : memref<1x25x32xf32, #tpu.memory_space<vmem>>, vector<1x25x32xf32>,
    return
  }
  func.func @transform_0(%arg0: i32) -> (i32, i32, i32) {
    %c0_i32 = arith.constant 0 : i32
    %c0_i32_0 = arith.constant 0 : i32
    %c0_i32_1 = arith.constant 0 : i32
    return %arg0, %c0_i32, %c0_i32_0 : i32, i32, i32
  }
  func.func @transform_1(%arg0: i32) -> (i32, i32) {
    %c0_i32 = arith.constant 0 : i32
    %c0_i32_0 = arith.constant 0 : i32
    %c0_i32_1 = arith.constant 0 : i32
    return %c0_i32, %c0_i32_0 : i32, i32
  }
  func.func @transform_2(%arg0: i32) -> (i32, i32) {
    %c0_i32 = arith.constant 0 : i32
    %c0_i32_0 = arith.constant 0 : i32
    %c0_i32_1 = arith.constant 0 : i32
    return %c0_i32, %c0_i32_0 : i32, i32
  }
  func.func @transform_3(%arg0: i32) -> (i32, i32) {
    %c0_i32 = arith.constant 0 : i32
    %c0_i32_0 = arith.constant 0 : i32
    %c0_i32_1 = arith.constant 0 : i32
    return %c0_i32, %c0_i32_0 : i32, i32
  }
  func.func @transform_4(%arg0: i32) -> (i32, i32) {
    %c0_i32 = arith.constant 0 : i32
    %c0_i32_0 = arith.constant 0 : i32
    %c0_i32_1 = arith.constant 0 : i32
    return %c0_i32, %c0_i32_0 : i32, i32
  }
  func.func @transform_5(%arg0: i32) -> (i32, i32, i32) {
    %c0_i32 = arith.constant 0 : i32
    %c0_i32_0 = arith.constant 0 : i32
    %c0_i32_1 = arith.constant 0 : i32
    return %arg0, %c0_i32, %c0_i32_0 : i32, i32, i32
  }
}

</mosaic_0001>

<llo_original>
// kernel: tpu_custom_call.1
$region0: #{tpu_custom_call.1}
  #allocation0 [shape = 'u32[]', space=smem, size = 0x4, offset = 0x4, fixed_abs, tag = 'smem constant byte address 0x4 - core index']
  #allocation1 [shape = 'u32[72,128]{1,0:T(1,128)}', space=vmem, size = 0x9000, scoped, tag = 'internal scratch']
  %s0 = inlined_call_operand.vmem [shape: f32[2,25,32], index: 0, kind: input, shape index: {}]
  %s1 = inlined_call_operand.vmem [shape: f32[32,96], index: 1, kind: input, shape index: {}]
  %s2 = inlined_call_operand.vmem [shape: f32[1,96], index: 2, kind: input, shape index: {}]
  %s3 = inlined_call_operand.vmem [shape: f32[32,32], index: 3, kind: input, shape index: {}]
  %s4 = inlined_call_operand.vmem [shape: f32[1,32], index: 4, kind: input, shape index: {}]
  %s5 = inlined_call_operand.vmem [shape: f32[2,25,32], index: 5, kind: output, shape index: {}]
  %s6 = sld [smem:[#allocation0]]
  $region53: #{tpu_custom_call.1} parent=0
    _
  %s8 = ssub.s32 1, %s6
  %s9 = scalar_select 0, %s8, %s6
  loop: start=0, step=1, limit=4
  $region2: #{tpu_custom_call.1} parent=0 // loop_pre_header
    _
  $region3: #{tpu_custom_call.1} parent=0 // loop_header
    %s11 = sphi 0, %s15
    %p12 = scmp.ge.s32.totalorder %s11, 4
    %s21 = sphi 0, %s23
    %s24 = sphi 0, %s21
    %s25 = sphi 0, %s24
    %s41 = sphi 0, %s25
    %s45 = sphi 0, %s45
    %s47 = sphi 0, %s45
    %s48 = sphi 0, %s47
    %s62 = sphi 0, %s48
    %s66 = sphi 0, %s66
    %s68 = sphi 0, %s66
    %s69 = sphi 0, %s68
    %s83 = sphi 0, %s69
    %s87 = sphi 0, %s87
    %s89 = sphi 0, %s87
    %s90 = sphi 0, %s89
    %s104 = sphi 0, %s90
    %s108 = sphi 0, %s108
    %s110 = sphi 0, %s108
    %s111 = sphi 0, %s110
    %s125 = sphi 0, %s111
    %s131 = sphi 0, %s133
    %s134 = sphi 0, %s131
    %s135 = sphi 0, %s134
    %s151 = sphi 0, %s135
  $region4: #{tpu_custom_call.1} parent=0 // loop_header_branch
    %14 = sbr.rel (%p12) target = $region8
  $region5: #{tpu_custom_call.1} parent=0 // loop_body
    %s16 = ssub.s32 %s11, 1
    %s17 = ssub.s32 %s11, 2
    %s18 = sadd.s32 %s11, 1
    %s19 = ssub.s32 %s11, %s18
    %p20 = scmp.eq.s32.totalorder %s19, 0
    %s22 = sadd.s32 %s21, 1
    %s23 = scalar_select %p20, %s21, %s22
    %p26 = pneg %p20
    %p27 = scmp.eq.s32.totalorder %s11, 1
    %p28 = por %p26, %p27
    %p29 = scmp.ne.s32.totalorder %s21, %s24
    %p30 = scmp.eq.s32.totalorder %s11, 0
    %p31 = por %p29, %p30
    %p32 = scmp.ne.s32.totalorder %s21, %s24
    %p33 = scmp.eq.s32.totalorder %s16, 1
    %p34 = por %p32, %p33
    %p35 = scmp.ne.s32.totalorder %s24, %s25
    %p36 = scmp.eq.s32.totalorder %s16, 0
    %p37 = por %p35, %p36
    %p38 = scmp.ne.s32.totalorder %s24, %s25
    %p39 = scmp.eq.s32.totalorder %s17, 1
    %p40 = por %p38, %p39
    %p42 = scmp.ne.s32.totalorder %s25, %s41
    %p43 = scmp.eq.s32.totalorder %s17, 0
    %p44 = por %p42, %p43
    %s46 = sadd.s32 %s45, 1
    %p49 = scmp.eq.s32.totalorder %s11, 1
    %p50 = scmp.ne.s32.totalorder %s45, %s47
    %p51 = scmp.eq.s32.totalorder %s11, 0
    %p52 = por %p50, %p51
    %p53 = scmp.ne.s32.totalorder %s45, %s47
    %p54 = scmp.eq.s32.totalorder %s16, 1
    %p55 = por %p53, %p54
    %p56 = scmp.ne.s32.totalorder %s47, %s48
    %p57 = scmp.eq.s32.totalorder %s16, 0
    %p58 = por %p56, %p57
    %p59 = scmp.ne.s32.totalorder %s47, %s48
    %p60 = scmp.eq.s32.totalorder %s17, 1
    %p61 = por %p59, %p60
    %p63 = scmp.ne.s32.totalorder %s48, %s62
    %p64 = scmp.eq.s32.totalorder %s17, 0
    %p65 = por %p63, %p64
    %s67 = sadd.s32 %s66, 1
    %p70 = scmp.eq.s32.totalorder %s11, 1
    %p71 = scmp.ne.s32.totalorder %s66, %s68
    %p72 = scmp.eq.s32.totalorder %s11, 0
    %p73 = por %p71, %p72
    %p74 = scmp.ne.s32.totalorder %s66, %s68
    %p75 = scmp.eq.s32.totalorder %s16, 1
    %p76 = por %p74, %p75
    %p77 = scmp.ne.s32.totalorder %s68, %s69
    %p78 = scmp.eq.s32.totalorder %s16, 0
    %p79 = por %p77, %p78
    %p80 = scmp.ne.s32.totalorder %s68, %s69
    %p81 = scmp.eq.s32.totalorder %s17, 1
    %p82 = por %p80, %p81
    %p84 = scmp.ne.s32.totalorder %s69, %s83
    %p85 = scmp.eq.s32.totalorder %s17, 0
    %p86 = por %p84, %p85
    %s88 = sadd.s32 %s87, 1
    %p91 = scmp.eq.s32.totalorder %s11, 1
    %p92 = scmp.ne.s32.totalorder %s87, %s89
    %p93 = scmp.eq.s32.totalorder %s11, 0
    %p94 = por %p92, %p93
    %p95 = scmp.ne.s32.totalorder %s87, %s89
    %p96 = scmp.eq.s32.totalorder %s16, 1
    %p97 = por %p95, %p96
    %p98 = scmp.ne.s32.totalorder %s89, %s90
    %p99 = scmp.eq.s32.totalorder %s16, 0
    %p100 = por %p98, %p99
    %p101 = scmp.ne.s32.totalorder %s89, %s90
    %p102 = scmp.eq.s32.totalorder %s17, 1
    %p103 = por %p101, %p102
    %p105 = scmp.ne.s32.totalorder %s90, %s104
    %p106 = scmp.eq.s32.totalorder %s17, 0
    %p107 = por %p105, %p106
    %s109 = sadd.s32 %s108, 1
    %p112 = scmp.eq.s32.totalorder %s11, 1
    %p113 = scmp.ne.s32.totalorder %s108, %s110
    %p114 = scmp.eq.s32.totalorder %s11, 0
    %p115 = por %p113, %p114
    %p116 = scmp.ne.s32.totalorder %s108, %s110
    %p117 = scmp.eq.s32.totalorder %s16, 1
    %p118 = por %p116, %p117
    %p119 = scmp.ne.s32.totalorder %s110, %s111
    %p120 = scmp.eq.s32.totalorder %s16, 0
    %p121 = por %p119, %p120
    %p122 = scmp.ne.s32.totalorder %s110, %s111
    %p123 = scmp.eq.s32.totalorder %s17, 1
    %p124 = por %p122, %p123
    %p126 = scmp.ne.s32.totalorder %s111, %s125
    %p127 = scmp.eq.s32.totalorder %s17, 0
    %p128 = por %p126, %p127
    %s129 = ssub.s32 %s11, %s18
    %p130 = scmp.eq.s32.totalorder %s129, 0
    %s132 = sadd.s32 %s131, 1
    %s133 = scalar_select %p130, %s131, %s132
    %p136 = pneg %p130
    %p137 = scmp.eq.s32.totalorder %s11, 1
    %p138 = por %p136, %p137
    %p139 = scmp.ne.s32.totalorder %s131, %s134
    %p140 = scmp.eq.s32.totalorder %s11, 0
    %p141 = por %p139, %p140
    %p142 = scmp.ne.s32.totalorder %s131, %s134
    %p143 = scmp.eq.s32.totalorder %s16, 1
    %p144 = por %p142, %p143
    %p145 = scmp.ne.s32.totalorder %s134, %s135
    %p146 = scmp.eq.s32.totalorder %s16, 0
    %p147 = por %p145, %p146
    %p148 = scmp.ne.s32.totalorder %s134, %s135
    %p149 = scmp.eq.s32.totalorder %s17, 1
    %p150 = por %p148, %p149
    %p152 = scmp.ne.s32.totalorder %s135, %s151
    %p153 = scmp.eq.s32.totalorder %s17, 0
    %p154 = por %p152, %p153
    %p155 = scmp.le.s32.totalorder 1, %s11
    %p156 = scmp.lt.s32.totalorder %s11, 3
    %p157 = pnand %p155, %p156
    %p158 = pneg %p157
    // Predicated region
    $region9: #{tpu_custom_call.1} parent=5 // pred_check
      _
    $region10: #{tpu_custom_call.1} parent=5 // pred_check_branch
      %160 = sbr.rel (%p157) target = $region12
    $region11: #{tpu_custom_call.1} parent=5 // pred_region
      %s161 = ssub.s32 %s11, 1
      // Predicated region
      $region13: #{tpu_custom_call.1} parent=11 // pred_check
        %p162 = pneg %p58
      $region14: #{tpu_custom_call.1} parent=11 // pred_check_branch
        %164 = sbr.rel (%p162) target = $region16
      $region15: #{tpu_custom_call.1} parent=11 // pred_region
        _
      $region16: #{tpu_custom_call.1} parent=11 // pred_fallthru
        _
      // Predicated region
      $region17: #{tpu_custom_call.1} parent=11 // pred_check
        %p165 = pneg %p79
      $region18: #{tpu_custom_call.1} parent=11 // pred_check_branch
        %167 = sbr.rel (%p165) target = $region20
      $region19: #{tpu_custom_call.1} parent=11 // pred_region
        _
      $region20: #{tpu_custom_call.1} parent=11 // pred_fallthru
        _
      // Predicated region
      $region21: #{tpu_custom_call.1} parent=11 // pred_check
        %p168 = pneg %p100
      $region22: #{tpu_custom_call.1} parent=11 // pred_check_branch
        %170 = sbr.rel (%p168) target = $region24
      $region23: #{tpu_custom_call.1} parent=11 // pred_region
        _
      $region24: #{tpu_custom_call.1} parent=11 // pred_fallthru
        _
      // Predicated region
      $region25: #{tpu_custom_call.1} parent=11 // pred_check
        %p171 = pneg %p121
      $region26: #{tpu_custom_call.1} parent=11 // pred_check_branch
        %173 = sbr.rel (%p171) target = $region28
      $region27: #{tpu_custom_call.1} parent=11 // pred_region
        _
      $region28: #{tpu_custom_call.1} parent=11 // pred_fallthru
        _
    $region12: #{tpu_custom_call.1} parent=5 // pred_fallthru
      _
    %p174 = scmp.lt.s32.totalorder %s11, 2
    // Predicated region
    $region29: #{tpu_custom_call.1} parent=5 // pred_check
      %p175 = pneg %p174
    $region30: #{tpu_custom_call.1} parent=5 // pred_check_branch
      %177 = sbr.rel (%p175) target = $region32
    $region31: #{tpu_custom_call.1} parent=5 // pred_region
      // Predicated region
      $region33: #{tpu_custom_call.1} parent=31 // pred_check
        %p178 = pneg %p31
      $region34: #{tpu_custom_call.1} parent=31 // pred_check_branch
        %180 = sbr.rel (%p178) target = $region36
      $region35: #{tpu_custom_call.1} parent=31 // pred_region
        %p181 = scmp.lt.s32.totalorder %s11, 1
        %s182 = scalar_select %p181, %s11, 1
        %s183 = smul.addr %s182, 4
        %s184 = smul.addr %s183, 8
        %s185 = scalar_lea.vmem %s0, %s184
      $region36: #{tpu_custom_call.1} parent=31 // pred_fallthru
        _
    $region32: #{tpu_custom_call.1} parent=5 // pred_fallthru
      _
    %p186 = scmp.le.s32.totalorder 1, %s11
    %p187 = scmp.lt.s32.totalorder %s11, 3
    %p188 = pnand %p186, %p187
    %p189 = pneg %p188
    // Predicated region
    $region37: #{tpu_custom_call.1} parent=5 // pred_check
      _
    $region38: #{tpu_custom_call.1} parent=5 // pred_check_branch
      %191 = sbr.rel (%p188) target = $region40
    $region39: #{tpu_custom_call.1} parent=5 // pred_region
      %s192 = ssub.s32 %s11, 1
      %p193 = scmp.lt.s32.totalorder %s16, 1
      %s194 = scalar_select %p193, %s16, 1
      %s195 = smul.addr %s194, 4
      %s196 = smul.addr %s195, 8
      %s197 = scalar_lea.vmem %s0, %s196
      %p198 = pneg %p37
      %p199 = pneg %p34
      %p200 = pneg %p58
      %p201 = pneg %p55
      %p202 = pneg %p79
      %p203 = pneg %p76
      %p204 = pneg %p100
      %p205 = pneg %p97
      %p206 = pneg %p121
      %p207 = pneg %p118
      %p208 = pneg %p147
      %p209 = pneg %p144
      %p210 = scmp.lt.s32.totalorder %s16, 1
      %s211 = scalar_select %p210, %s16, 1
      %s212 = smul.addr %s211, 4
      %s213 = smul.addr %s212, 8
      %s214 = scalar_lea.vmem %s5, %s213
      %p215 = scmp.lt.s32.totalorder %s16, 1
      %s216 = scalar_select %p215, %s16, 1
      %s217 = smul.addr %s216, 4
      %s218 = smul.addr %s217, 8
      %s219 = scalar_lea.vmem %s0, %s218
      %p220 = scmp.lt.s32.totalorder %s16, 1
      %s221 = scalar_select %p220, %s16, 1
      %s222 = smul.addr %s221, 4
      %s223 = smul.addr %s222, 8
      %s224 = scalar_lea.vmem %s5, %s223
      %v225 = vld [vmem:[%s219] sm:$0xff]
      %v226 = vld [vmem:[%s219 + $0x8] sm:$0xff]
      %v227 = vld [vmem:[%s219 + $0x10] sm:$0xff]
      %v228 = vld [vmem:[%s219 + $0x18] sm:$0x1]
      %v229 = vld [vmem:[%s1] sm:$0xff]
      %v230 = vld [vmem:[%s1 + $0x8] sm:$0xff]
      %v231 = vld [vmem:[%s1 + $0x10] sm:$0xff]
      %v232 = vld [vmem:[%s1 + $0x18] sm:$0xff]
      %v233 = vld [vmem:[%s2] sm:$0x1]
      %v235 = vperm.slane %v233, 0
      %vm237 = vcmask 261120
      %v239 = vsel %vm237, %v225, 0
      %v242 = vsel %vm237, %v226, 0
      %v245 = vsel %vm237, %v227, 0
      %v248 = vsel %vm237, %v228, 0
      %250 = vmatpush.msra.mxu0 0.0
      %251 = vmatpush.msra.mxu0 0.0
      %252 = vmatpush.msra.mxu0 0.0
      %253 = vmatpush.msra.mxu0 0.0
      %254 = vmatpush.msra.mxu0 0.0
      %255 = vmatpush.msra.mxu0 0.0
      %256 = vmatpush.msra.mxu0 0.0
      %257 = vmatpush.msra.mxu0 0.0
      %258 = vmatpush.msra.mxu0 0.0
      %259 = vmatpush.msra.mxu0 0.0
      %260 = vmatpush.msra.mxu0 0.0
      %261 = vmatpush.msra.mxu0 0.0
      %262 = vmatpush.msra.mxu0 %v232
      %263 = vmatpush.msra.mxu0 %v231
      %264 = vmatpush.msra.mxu0 %v230
      %265 = vmatpush.msra.mxu0 %v229
      %266 = vmatmul.f32.gmra.mxu0 %v239
      %v267 = vpop.f32.mrf.mxu0
      %v268 = vadd.f32 %v235, %v267
      %269 = vmatmul.f32.gmra.mxu0 %v242
      %v270 = vpop.f32.mrf.mxu0
      %v271 = vadd.f32 %v235, %v270
      %272 = vmatmul.f32.gmra.mxu0 %v245
      %v273 = vpop.f32.mrf.mxu0
      %v274 = vadd.f32 %v235, %v273
      %275 = vmatmul.f32.gmra.mxu0 %v248
      %v276 = vpop.f32.mrf.mxu0
      %v277 = vadd.f32 %v235, %v276
      %278 = vdwg.mxu0
      %v279 = vlaneseq
      %v280 = vshrl.u32 %v279, 7
      %v281 = vadd.s32 %v280, 8
      %v282 = vadd.s32 %v280, 16
      %v283 = vadd.s32 %v280, 24
      %v284 = vlaneseq
      %v285 = vand.u32 %v284, 127
      %vm286 = vcmp.ge.s32.totalorder %v280, 1
      %vm287 = vcmp.ge.s32.totalorder %v281, 1
      %vm288 = vcmp.ge.s32.totalorder %v282, 1
      %vm289 = vcmp.ge.s32.totalorder %v283, 1
      %vm290 = vcmp.lt.s32.totalorder %v280, 9
      %vm291 = vcmp.lt.s32.totalorder %v281, 9
      %vm292 = vcmp.lt.s32.totalorder %v282, 9
      %vm293 = vcmp.lt.s32.totalorder %v283, 9
      %vm294 = vmand %vm286, %vm290
      %vm295 = vmand %vm287, %vm291
      %vm296 = vmand %vm288, %vm292
      %vm297 = vmand %vm289, %vm293
      %vm298 = vcmp.ge.s32.totalorder %v285, 1
      %vm299 = vcmp.lt.s32.totalorder %v285, 9
      %vm300 = vmand %vm298, %vm299
      %vm301 = vmxor %vm300, 1
      %vm302 = vmand %vm294, %vm301
      %vm303 = vmand %vm295, %vm301
      %vm304 = vmand %vm296, %vm301
      %vm305 = vmand %vm297, %vm301
      %310 = vrot.lane.b32.xlu0 %v268, 96
      %v311 = vpop.permute.xlu0 %310
      %312 = vrot.lane.b32.xlu0 %v271, 96
      %v313 = vpop.permute.xlu0 %312
      %314 = vrot.lane.b32.xlu0 %v274, 96
      %v315 = vpop.permute.xlu0 %314
      %316 = vrot.lane.b32.xlu0 %v277, 96
      %v317 = vpop.permute.xlu0 %316
      %vm318 = vcmask 130048
      %v319 = vsel %vm318, %v268, 0
      %v321 = vsel %vm318, %v271, 0
      %v323 = vsel %vm318, %v274, 0
      %v325 = vsel %vm318, %v277, 0
      %v327 = vsel %vm318, %v311, 0
      %v329 = vsel %vm318, %v313, 0
      %v331 = vsel %vm318, %v315, 0
      %v333 = vsel %vm318, %v317, 0
      %335 = vmatpush.xpose.msra.mxu0 0.0
      %336 = vmatpush.xpose.msra.mxu0 0.0
      %337 = vmatpush.xpose.msra.mxu0 0.0
      %338 = vmatpush.xpose.msra.mxu0 0.0
      %339 = vmatpush.xpose.msra.mxu0 0.0
      %340 = vmatpush.xpose.msra.mxu0 0.0
      %341 = vmatpush.xpose.msra.mxu0 0.0
      %342 = vmatpush.xpose.msra.mxu0 0.0
      %343 = vmatpush.xpose.msra.mxu0 0.0
      %344 = vmatpush.xpose.msra.mxu0 0.0
      %345 = vmatpush.xpose.msra.mxu0 0.0
      %346 = vmatpush.xpose.msra.mxu0 0.0
      %347 = vmatpush.xpose.msra.mxu0 %v333
      %348 = vmatpush.xpose.msra.mxu0 %v331
      %349 = vmatpush.xpose.msra.mxu0 %v329
      %350 = vmatpush.xpose.msra.mxu0 %v327
      %351 = vmatmul.f32.gmra.mxu0 %v319
      %v352 = vpop.f32.mrf.mxu0
      %v353 = vadd.f32 0.0, %v352
      %354 = vmatmul.f32.gmra.mxu0 %v321
      %v355 = vpop.f32.mrf.mxu0
      %v356 = vadd.f32 0.0, %v355
      %357 = vmatmul.f32.gmra.mxu0 %v323
      %v358 = vpop.f32.mrf.mxu0
      %v359 = vadd.f32 0.0, %v358
      %360 = vmatmul.f32.gmra.mxu0 %v325
      %v361 = vpop.f32.mrf.mxu0
      %v362 = vadd.f32 0.0, %v361
      %363 = vdwg.mxu0
      %v364 = vmul.f32 %v353, 0.25
      %v365 = vmul.f32 %v356, 0.25
      %v366 = vmul.f32 %v359, 0.25
      %v367 = vmul.f32 %v362, 0.25
      %v368 = vsel %vm302, -1e+30, %v364
      %v369 = vsel %vm303, -1e+30, %v365
      %v370 = vsel %vm304, -1e+30, %v366
      %v371 = vsel %vm305, -1e+30, %v367
      %vm372 = vcmask 203776
      %v373 = vsel %vm372, %v368, -inf
      %374 = vmax.xlane.f32.xlu0 %v373
      %v375 = vpop.xlane.xlu0 %374
      %v376 = vsel %vm372, %v369, -inf
      %377 = vmax.xlane.f32.xlu0 %v376
      %v378 = vpop.xlane.xlu0 %377
      %v379 = vsel %vm372, %v370, -inf
      %380 = vmax.xlane.f32.xlu0 %v379
      %v381 = vpop.xlane.xlu0 %380
      %vm382 = vcmask 196608
      %v383 = vsel %vm382, %v371, -inf
      %384 = vmax.xlane.f32.xlu0 %v383
      %v385 = vpop.xlane.xlu0 %384
      %v386 = vsub.f32 %v368, %v375
      %v387 = vsub.f32 %v369, %v378
      %v388 = vsub.f32 %v370, %v381
      %v389 = vsub.f32 %v371, %v385
      %v390 = vmul.f32 %v386, 1.442695
      %v391 = vpow.pop %v390
      %v392 = vmul.f32 %v387, 1.442695
      %v393 = vpow.pop %v392
      %v394 = vmul.f32 %v388, 1.442695
      %v395 = vpow.pop %v394
      %v396 = vmul.f32 %v389, 1.442695
      %v397 = vpow.pop %v396
      %v398 = vsel %vm372, %v391, 0.0
      %399 = vadd.xlane.f32.xlu0 %v398
      %v400 = vpop.xlane.xlu0 %399
      %v401 = vsel %vm372, %v393, 0.0
      %402 = vadd.xlane.f32.xlu0 %v401
      %v403 = vpop.xlane.xlu0 %402
      %v404 = vsel %vm372, %v395, 0.0
      %405 = vadd.xlane.f32.xlu0 %v404
      %v406 = vpop.xlane.xlu0 %405
      %v407 = vsel %vm382, %v397, 0.0
      %408 = vadd.xlane.f32.xlu0 %v407
      %v409 = vpop.xlane.xlu0 %408
      %v410 = vrcp.pop %v400
      %v411 = vrcp.pop %v403
      %v412 = vrcp.pop %v406
      %v413 = vrcp.pop %v409
      %v414 = vmul.f32 %v391, %v410
      %v415 = vmul.f32 %v393, %v411
      %v416 = vmul.f32 %v395, %v412
      %v417 = vmul.f32 %v397, %v413
      %418 = vrot.lane.b32.xlu0 %v268, 64
      %v419 = vpop.permute.xlu0 %418
      %420 = vrot.lane.b32.xlu0 %v271, 64
      %v421 = vpop.permute.xlu0 %420
      %422 = vrot.lane.b32.xlu0 %v274, 64
      %v423 = vpop.permute.xlu0 %422
      %424 = vrot.lane.b32.xlu0 %v277, 64
      %v425 = vpop.permute.xlu0 %424
      %v430 = vsel %vm372, %v414, 0
      %v433 = vsel %vm372, %v415, 0
      %v436 = vsel %vm372, %v416, 0
      %v439 = vsel %vm372, %v417, 0
      %vm441 = vcmask 1040384
      %v442 = vsel %vm441, %v425, 0
      %444 = vmatpush.msra.mxu0 0.0
      %445 = vmatpush.msra.mxu0 0.0
      %446 = vmatpush.msra.mxu0 0.0
      %447 = vmatpush.msra.mxu0 0.0
      %448 = vmatpush.msra.mxu0 0.0
      %449 = vmatpush.msra.mxu0 0.0
      %450 = vmatpush.msra.mxu0 0.0
      %451 = vmatpush.msra.mxu0 0.0
      %452 = vmatpush.msra.mxu0 0.0
      %453 = vmatpush.msra.mxu0 0.0
      %454 = vmatpush.msra.mxu0 0.0
      %455 = vmatpush.msra.mxu0 0.0
      %456 = vmatpush.msra.mxu0 %v442
      %457 = vmatpush.msra.mxu0 %v423
      %458 = vmatpush.msra.mxu0 %v421
      %459 = vmatpush.msra.mxu0 %v419
      %460 = vmatmul.f32.gmra.mxu0 %v430
      %v461 = vpop.f32.mrf.mxu0
      %v462 = vadd.f32 0.0, %v461
      %463 = vmatmul.f32.gmra.mxu0 %v433
      %v464 = vpop.f32.mrf.mxu0
      %v465 = vadd.f32 0.0, %v464
      %466 = vmatmul.f32.gmra.mxu0 %v436
      %v467 = vpop.f32.mrf.mxu0
      %v468 = vadd.f32 0.0, %v467
      %469 = vmatmul.f32.gmra.mxu0 %v439
      %v470 = vpop.f32.mrf.mxu0
      %v471 = vadd.f32 0.0, %v470
      %472 = vdwg.mxu0
      %473 = vrot.lane.b32.xlu0 %v268, 112
      %v474 = vpop.permute.xlu0 %473
      %475 = vrot.lane.b32.xlu0 %v271, 112
      %v476 = vpop.permute.xlu0 %475
      %477 = vrot.lane.b32.xlu0 %v274, 112
      %v478 = vpop.permute.xlu0 %477
      %479 = vrot.lane.b32.xlu0 %v277, 112
      %v480 = vpop.permute.xlu0 %479
      %481 = vrot.lane.b32.xlu0 %v268, 80
      %v482 = vpop.permute.xlu0 %481
      %483 = vrot.lane.b32.xlu0 %v271, 80
      %v484 = vpop.permute.xlu0 %483
      %485 = vrot.lane.b32.xlu0 %v274, 80
      %v486 = vpop.permute.xlu0 %485
      %487 = vrot.lane.b32.xlu0 %v277, 80
      %v488 = vpop.permute.xlu0 %487
      %v489 = vsel %vm318, %v474, 0
      %v491 = vsel %vm318, %v476, 0
      %v493 = vsel %vm318, %v478, 0
      %v495 = vsel %vm318, %v480, 0
      %v497 = vsel %vm318, %v482, 0
      %v499 = vsel %vm318, %v484, 0
      %v501 = vsel %vm318, %v486, 0
      %v503 = vsel %vm318, %v488, 0
      %505 = vmatpush.xpose.msra.mxu0 0.0
      %506 = vmatpush.xpose.msra.mxu0 0.0
      %507 = vmatpush.xpose.msra.mxu0 0.0
      %508 = vmatpush.xpose.msra.mxu0 0.0
      %509 = vmatpush.xpose.msra.mxu0 0.0
      %510 = vmatpush.xpose.msra.mxu0 0.0
      %511 = vmatpush.xpose.msra.mxu0 0.0
      %512 = vmatpush.xpose.msra.mxu0 0.0
      %513 = vmatpush.xpose.msra.mxu0 0.0
      %514 = vmatpush.xpose.msra.mxu0 0.0
      %515 = vmatpush.xpose.msra.mxu0 0.0
      %516 = vmatpush.xpose.msra.mxu0 0.0
      %517 = vmatpush.xpose.msra.mxu0 %v503
      %518 = vmatpush.xpose.msra.mxu0 %v501
      %519 = vmatpush.xpose.msra.mxu0 %v499
      %520 = vmatpush.xpose.msra.mxu0 %v497
      %521 = vmatmul.f32.gmra.mxu0 %v489
      %v522 = vpop.f32.mrf.mxu0
      %v523 = vadd.f32 0.0, %v522
      %524 = vmatmul.f32.gmra.mxu0 %v491
      %v525 = vpop.f32.mrf.mxu0
      %v526 = vadd.f32 0.0, %v525
      %527 = vmatmul.f32.gmra.mxu0 %v493
      %v528 = vpop.f32.mrf.mxu0
      %v529 = vadd.f32 0.0, %v528
      %530 = vmatmul.f32.gmra.mxu0 %v495
      %v531 = vpop.f32.mrf.mxu0
      %v532 = vadd.f32 0.0, %v531
      %533 = vdwg.mxu0
      %v534 = vmul.f32 %v523, 0.25
      %v535 = vmul.f32 %v526, 0.25
      %v536 = vmul.f32 %v529, 0.25
      %v537 = vmul.f32 %v532, 0.25
      %v538 = vsel %vm302, -1e+30, %v534
      %v539 = vsel %vm303, -1e+30, %v535
      %v540 = vsel %vm304, -1e+30, %v536
      %v541 = vsel %vm305, -1e+30, %v537
      %v542 = vsel %vm372, %v538, -inf
      %543 = vmax.xlane.f32.xlu0 %v542
      %v544 = vpop.xlane.xlu0 %543
      %v545 = vsel %vm372, %v539, -inf
      %546 = vmax.xlane.f32.xlu0 %v545
      %v547 = vpop.xlane.xlu0 %546
      %v548 = vsel %vm372, %v540, -inf
      %549 = vmax.xlane.f32.xlu0 %v548
      %v550 = vpop.xlane.xlu0 %549
      %v551 = vsel %vm382, %v541, -inf
      %552 = vmax.xlane.f32.xlu0 %v551
      %v553 = vpop.xlane.xlu0 %552
      %v554 = vsub.f32 %v538, %v544
      %v555 = vsub.f32 %v539, %v547
      %v556 = vsub.f32 %v540, %v550
      %v557 = vsub.f32 %v541, %v553
      %v558 = vmul.f32 %v554, 1.442695
      %v559 = vpow.pop %v558
      %v560 = vmul.f32 %v555, 1.442695
      %v561 = vpow.pop %v560
      %v562 = vmul.f32 %v556, 1.442695
      %v563 = vpow.pop %v562
      %v564 = vmul.f32 %v557, 1.442695
      %v565 = vpow.pop %v564
      %v566 = vsel %vm372, %v559, 0.0
      %567 = vadd.xlane.f32.xlu0 %v566
      %v568 = vpop.xlane.xlu0 %567
      %v569 = vsel %vm372, %v561, 0.0
      %570 = vadd.xlane.f32.xlu0 %v569
      %v571 = vpop.xlane.xlu0 %570
      %v572 = vsel %vm372, %v563, 0.0
      %573 = vadd.xlane.f32.xlu0 %v572
      %v574 = vpop.xlane.xlu0 %573
      %v575 = vsel %vm382, %v565, 0.0
      %576 = vadd.xlane.f32.xlu0 %v575
      %v577 = vpop.xlane.xlu0 %576
      %v578 = vrcp.pop %v568
      %v579 = vrcp.pop %v571
      %v580 = vrcp.pop %v574
      %v581 = vrcp.pop %v577
      %v582 = vmul.f32 %v559, %v578
      %v583 = vmul.f32 %v561, %v579
      %v584 = vmul.f32 %v563, %v580
      %v585 = vmul.f32 %v565, %v581
      %586 = vrot.lane.b32.xlu0 %v268, 48
      %v587 = vpop.permute.xlu0 %586
      %588 = vrot.lane.b32.xlu0 %v271, 48
      %v589 = vpop.permute.xlu0 %588
      %590 = vrot.lane.b32.xlu0 %v274, 48
      %v591 = vpop.permute.xlu0 %590
      %592 = vrot.lane.b32.xlu0 %v277, 48
      %v593 = vpop.permute.xlu0 %592
      %v598 = vsel %vm372, %v582, 0
      %v601 = vsel %vm372, %v583, 0
      %v604 = vsel %vm372, %v584, 0
      %v607 = vsel %vm372, %v585, 0
      %v609 = vsel %vm441, %v593, 0
      %611 = vmatpush.msra.mxu0 0.0
      %612 = vmatpush.msra.mxu0 0.0
      %613 = vmatpush.msra.mxu0 0.0
      %614 = vmatpush.msra.mxu0 0.0
      %615 = vmatpush.msra.mxu0 0.0
      %616 = vmatpush.msra.mxu0 0.0
      %617 = vmatpush.msra.mxu0 0.0
      %618 = vmatpush.msra.mxu0 0.0
      %619 = vmatpush.msra.mxu0 0.0
      %620 = vmatpush.msra.mxu0 0.0
      %621 = vmatpush.msra.mxu0 0.0
      %622 = vmatpush.msra.mxu0 0.0
      %623 = vmatpush.msra.mxu0 %v609
      %624 = vmatpush.msra.mxu0 %v591
      %625 = vmatpush.msra.mxu0 %v589
      %626 = vmatpush.msra.mxu0 %v587
      %627 = vmatmul.f32.gmra.mxu0 %v598
      %v628 = vpop.f32.mrf.mxu0
      %v629 = vadd.f32 0.0, %v628
      %630 = vmatmul.f32.gmra.mxu0 %v601
      %v631 = vpop.f32.mrf.mxu0
      %v632 = vadd.f32 0.0, %v631
      %633 = vmatmul.f32.gmra.mxu0 %v604
      %v634 = vpop.f32.mrf.mxu0
      %v635 = vadd.f32 0.0, %v634
      %636 = vmatmul.f32.gmra.mxu0 %v607
      %v637 = vpop.f32.mrf.mxu0
      %v638 = vadd.f32 0.0, %v637
      %639 = vdwg.mxu0
      %644 = vrot.lane.b32.xlu0 %v629, 16
      %v645 = vpop.permute.xlu0 %644
      %646 = vrot.lane.b32.xlu0 %v632, 16
      %v647 = vpop.permute.xlu0 %646
      %648 = vrot.lane.b32.xlu0 %v635, 16
      %v649 = vpop.permute.xlu0 %648
      %650 = vrot.lane.b32.xlu0 %v638, 16
      %v651 = vpop.permute.xlu0 %650
      %v656 = vsel %vm318, %v462, %v645
      %v657 = vsel %vm318, %v465, %v647
      %v658 = vsel %vm318, %v468, %v649
      %v659 = vsel %vm318, %v471, %v651
      %v660 = vld [vmem:[%s3] sm:$0xff]
      %v661 = vld [vmem:[%s3 + $0x8] sm:$0xff]
      %v662 = vld [vmem:[%s3 + $0x10] sm:$0xff]
      %v663 = vld [vmem:[%s3 + $0x18] sm:$0xff]
      %v664 = vld [vmem:[%s4] sm:$0x1]
      %v666 = vperm.slane %v664, 0
      %v669 = vsel %vm237, %v656, 0
      %v672 = vsel %vm237, %v657, 0
      %v675 = vsel %vm237, %v658, 0
      %v678 = vsel %vm237, %v659, 0
      %680 = vmatpush.msra.mxu0 0.0
      %681 = vmatpush.msra.mxu0 0.0
      %682 = vmatpush.msra.mxu0 0.0
      %683 = vmatpush.msra.mxu0 0.0
      %684 = vmatpush.msra.mxu0 0.0
      %685 = vmatpush.msra.mxu0 0.0
      %686 = vmatpush.msra.mxu0 0.0
      %687 = vmatpush.msra.mxu0 0.0
      %688 = vmatpush.msra.mxu0 0.0
      %689 = vmatpush.msra.mxu0 0.0
      %690 = vmatpush.msra.mxu0 0.0
      %691 = vmatpush.msra.mxu0 0.0
      %692 = vmatpush.msra.mxu0 %v663
      %693 = vmatpush.msra.mxu0 %v662
      %694 = vmatpush.msra.mxu0 %v661
      %695 = vmatpush.msra.mxu0 %v660
      %696 = vmatmul.f32.gmra.mxu0 %v669
      %v697 = vpop.f32.mrf.mxu0
      %v698 = vadd.f32 %v666, %v697
      %699 = vmatmul.f32.gmra.mxu0 %v672
      %v700 = vpop.f32.mrf.mxu0
      %v701 = vadd.f32 %v666, %v700
      %702 = vmatmul.f32.gmra.mxu0 %v675
      %v703 = vpop.f32.mrf.mxu0
      %v704 = vadd.f32 %v666, %v703
      %705 = vmatmul.f32.gmra.mxu0 %v678
      %v706 = vpop.f32.mrf.mxu0
      %v707 = vadd.f32 %v666, %v706
      %708 = vdwg.mxu0
      %709 = vst.msk [vmem:[%s224] sm:$0xff] %vm237, %v698
      %710 = vst.msk [vmem:[%s224 + $0x8] sm:$0xff] %vm237, %v701
      %711 = vst.msk [vmem:[%s224 + $0x10] sm:$0xff] %vm237, %v704
      %vm712 = vcmask 253952
      %713 = vst.msk [vmem:[%s224 + $0x18] sm:$0x1] %vm712, %v707
      %p714 = scmp.lt.s32.totalorder %s16, 1
      %s715 = scalar_select %p714, %s16, 1
      %s716 = smul.addr %s715, 4
      %s717 = smul.addr %s716, 8
      %s718 = scalar_lea.vmem %s5, %s717
      // Predicated region
      $region41: #{tpu_custom_call.1} parent=39 // pred_check
        %p719 = pneg %p144
      $region42: #{tpu_custom_call.1} parent=39 // pred_check_branch
        %721 = sbr.rel (%p719) target = $region44
      $region43: #{tpu_custom_call.1} parent=39 // pred_region
        _
      $region44: #{tpu_custom_call.1} parent=39 // pred_fallthru
        _
    $region40: #{tpu_custom_call.1} parent=5 // pred_fallthru
      _
    %p722 = scmp.le.s32.totalorder 2, %s11
    // Predicated region
    $region45: #{tpu_custom_call.1} parent=5 // pred_check
      %p723 = pneg %p722
    $region46: #{tpu_custom_call.1} parent=5 // pred_check_branch
      %725 = sbr.rel (%p723) target = $region48
    $region47: #{tpu_custom_call.1} parent=5 // pred_region
      %s726 = ssub.s32 %s11, 2
      // Predicated region
      $region49: #{tpu_custom_call.1} parent=47 // pred_check
        %p727 = pneg %p150
      $region50: #{tpu_custom_call.1} parent=47 // pred_check_branch
        %729 = sbr.rel (%p727) target = $region52
      $region51: #{tpu_custom_call.1} parent=47 // pred_region
        %p730 = scmp.lt.s32.totalorder %s17, 1
        %s731 = scalar_select %p730, %s17, 1
        %s732 = smul.addr %s731, 4
        %s733 = smul.addr %s732, 8
        %s734 = scalar_lea.vmem %s5, %s733
      $region52: #{tpu_custom_call.1} parent=47 // pred_fallthru
        _
    $region48: #{tpu_custom_call.1} parent=5 // pred_fallthru
      _
  $region6: #{tpu_custom_call.1} parent=0 // loop_footer
    %s15 = sadd.s32 1, %s11
  $region7: #{tpu_custom_call.1} parent=0 // loop_footer_branch
    %10 = sbr.rel target = $region3
  $region8: #{tpu_custom_call.1} parent=0 // loop_exit
    _

</llo_original>
